<compile_context>
chip_gen: v7x
topology: tpu7x:2x2x1
jax: 0.10.0
libtpu: 0.0.40
codegen_flags: <defaults>
</compile_context>

<pallas_src>
import jax
import jax.numpy as jnp
import numpy as np
from jax.experimental import pallas as pl
from jax.experimental.pallas import tpu as pltpu

EPS = 1e-5  # nn.BatchNorm2d default eps


# ----------------------------------------------------------------------------
# Pallas kernels
# ----------------------------------------------------------------------------
def _conv_stats_kernel(x_ref, w_ref, acc_ref, s1_ref, s2_ref):
    # x_ref:   (NB, H, W*Cin)        bf16  channel-packed input rows (no H pad)
    # w_ref:   (3*W*Cin, W*Cout)     bf16  K-stacked band conv weights
    # acc_ref: (NB, H, W*Cout)       f32   conv output (pre-BN)
    # s1_ref:  (1, 1, W*Cout)        f32   per-lane sum over this chunk
    # s2_ref:  (1, 1, W*Cout)        f32   per-lane sum of squares over this chunk
    nb, h, l = x_ref.shape
    m = acc_ref.shape[-1]

    x = x_ref[...]                                                 # (nb, h, l)
    zrow = jnp.zeros((nb, 1, l), x.dtype)
    # Zero-padded row shifts (per image, so image boundaries stay separated):
    #   x_top[h] = x_pad[h]   = x[h-1]   (zero for h == 0)
    #   x_bot[h] = x_pad[h+2] = x[h+1]   (zero for h == H-1)
    x_top = jnp.concatenate([zrow, x[:, :h - 1, :]], axis=1)
    x_bot = jnp.concatenate([x[:, 1:, :], zrow], axis=1)

    # K-stacked im2col slab: (nb*h, 3*l).  Lane order [kh=0 | kh=1 | kh=2]
    # matches the row order of the stacked band weight.
    xi = jnp.concatenate([x_top, x, x_bot], axis=-1).reshape(nb * h, 3 * l)

    # One lane-dense MXU matmul, f32 accumulation.
    acc = jnp.dot(xi, w_ref[...], preferred_element_type=jnp.float32)  # (nb*h, m)

    acc_ref[...] = acc.reshape(nb, h, m)                           # lane-dense store

    # Single-pass BN partials (per-lane; lane = w*Cout + co, folded in wrapper).
    s1_ref[...] = jnp.sum(acc, axis=0, keepdims=True)[None]
    s2_ref[...] = jnp.sum(acc * acc, axis=0, keepdims=True)[None]


def _bn_relu_kernel(y_ref, scale_ref, bias_ref, out_ref):
    # y_ref:     (N, H, W*Cout) f32 conv output (aliased with out_ref's buffer)
    # scale_ref: (1, W*Cout)    f32 folded BN scale (gamma / sqrt(var+eps))
    # bias_ref:  (1, W*Cout)    f32 folded BN bias  (beta - mean*scale)
    y = y_ref[...]
    s = scale_ref[...][:, None, :]
    b = bias_ref[...][:, None, :]
    out_ref[...] = jnp.maximum(y * s + b, 0.0)


# ----------------------------------------------------------------------------
# Wrapper-side helpers (layout / weight packing / upsample glue)
# ----------------------------------------------------------------------------
def _band_conv_weights(w_oihw, W):
    """(Cout, Cin, 3, 3) conv weight -> (3, W*Cin, W*Cout) band matrices.

    B[kh, w_in*Cin + ci, w_out*Cout + co] = w[co, ci, kh, w_in - w_out + 1]
    when 0 <= w_in - w_out + 1 <= 2, else 0, so that
        conv_out[h, w_out*Cout + co] = sum_kh  x_pad[h + kh, :] @ B[kh]
    reproduces Conv2d(kernel_size=3, padding=1, bias=False) on the
    channel-packed (row, W*Cin) layout.  Zero padding along W is implicit in
    the band structure; padding along H is handled by the kernel's zero rows.
    """
    Cout, Cin, KH, KW = w_oihw.shape
    w_f = w_oihw.astype(jnp.float32)
    l = jnp.arange(W * Cin)
    m = jnp.arange(W * Cout)
    w_in, ci = l // Cin, l % Cin
    w_out, co = m // Cout, m % Cout
    kw = w_in[:, None] - w_out[None, :] + 1                 # (L, M)
    valid = (kw >= 0) & (kw <= KW - 1)
    kw_c = jnp.clip(kw, 0, KW - 1)
    mats = []
    for kh in range(KH):
        w_kh = w_f[:, :, kh, :]                             # (Cout, Cin, KW)
        vals = w_kh[co[None, :], ci[:, None], kw_c]         # (L, M)
        mats.append(jnp.where(valid, vals, 0.0))
    return jnp.stack(mats, axis=0)                          # (3, W*Cin, W*Cout)


def _interp_matrix(n_in):
    # Row-interpolation matrix matching torch bilinear, scale_factor=2,
    # align_corners=False (half-pixel centers, negative src clamped to 0).
    n_out = 2 * n_in
    i = jnp.arange(n_out, dtype=jnp.float32)
    src = jnp.maximum(i * 0.5 - 0.25, 0.0)
    x0 = jnp.floor(src).astype(jnp.int32)
    x1 = jnp.minimum(x0 + 1, n_in - 1)
    frac = src - x0.astype(jnp.float32)
    m = (jax.nn.one_hot(x0, n_in, dtype=jnp.float32) * (1.0 - frac)[:, None]
         + jax.nn.one_hot(x1, n_in, dtype=jnp.float32) * frac[:, None])
    return m  # (2*n_in, n_in)


def upsample2x_bilinear_nhwc(x):
    # matches nn.Upsample(scale_factor=2, mode='bilinear', align_corners=False)
    _, H, W, _ = x.shape
    Mh = _interp_matrix(H)
    Mw = _interp_matrix(W)
    y = jnp.einsum('ph,nhwc->npwc', Mh, x)
    y = jnp.einsum('qw,npwc->npqc', Mw, y)
    return y


# ----------------------------------------------------------------------------
# Forward pass
# ----------------------------------------------------------------------------
@jax.jit
def decoder_block_forward(previous_nchw, skip_nchw, w_oihw, gamma, beta):
    N, Cp, _, _ = previous_nchw.shape
    Cs = skip_nchw.shape[1]
    Cout = w_oihw.shape[0]

    prev = jnp.transpose(previous_nchw, (0, 2, 3, 1)).astype(jnp.float32)
    skip = jnp.transpose(skip_nchw, (0, 2, 3, 1)).astype(jnp.float32)

    # TODO(synk): fuse upsample/concat/packing into the conv kernel to remove
    # the HBM round trip of the packed input (kept as wrapper glue for now).
    up = upsample2x_bilinear_nhwc(prev)                      # (N, H, W, Cp)
    H, W = up.shape[1:3]
    hs, ws = skip.shape[1:3]
    assert H <= hs and W <= ws, 'Using ceil_mode=True in pooling?'
    skip = skip[:, :H, :W, :]
    Cin = Cp + Cs
    L, M = W * Cin, W * Cout

    # Channel-packed (lane-dense) conv input: (N, H, W*Cin) bf16.  No H pad —
    # boundary rows are synthesised in-kernel.
    x = jnp.concatenate([up, skip], axis=-1)                 # (N, H, W, Cin)
    x2d = x.reshape(N, H, L).astype(jnp.bfloat16)            # free row-major reshape

    # K-stacked band weights: (3*W*Cin, W*Cout), rows ordered [kh=0; kh=1; kh=2].
    wstack = _band_conv_weights(w_oihw, W).astype(jnp.bfloat16).reshape(3 * L, M)

    # Batch-chunking: amortise grid-step overhead and grow MXU M (= NB*H rows
    # per step).  At this toy size the whole batch fits in one grid step.
    ROWS_PER_STEP = 256
    nb = max(1, min(N, ROWS_PER_STEP // max(H, 1)))
    while N % nb:
        nb -= 1
    num_chunks = N // nb

    acc, s1, s2 = pl.pallas_call(
        _conv_stats_kernel,
        out_shape=(jax.ShapeDtypeStruct((N, H, M), jnp.float32),
                   jax.ShapeDtypeStruct((num_chunks, 1, M), jnp.float32),
                   jax.ShapeDtypeStruct((num_chunks, 1, M), jnp.float32)),
        grid=(num_chunks,),
        in_specs=[pl.BlockSpec((nb, H, L), lambda c: (c, 0, 0)),
                  pl.BlockSpec((3 * L, M), lambda c: (0, 0))],
        out_specs=(pl.BlockSpec((nb, H, M), lambda c: (c, 0, 0)),
                   pl.BlockSpec((1, 1, M), lambda c: (c, 0, 0)),
                   pl.BlockSpec((1, 1, M), lambda c: (c, 0, 0))),
        compiler_params=pltpu.CompilerParams(
            dimension_semantics=("parallel",)),
    )(x2d, wstack)

    # Combine the tiny per-chunk partials into BatchNorm batch statistics
    # (training mode, biased variance) and fold gamma/beta into one
    # lane-aligned scale/bias row (hoisted out of the kernel grid loop).
    # Note: E[x^2]-E[x]^2 with a clamp is fine at this problem size; switch to
    # a shifted / Welford combine when scaling (cancellation risk).
    cnt = float(N * H * W)
    s1c = jnp.sum(s1.reshape(num_chunks, W, Cout), axis=(0, 1))
    s2c = jnp.sum(s2.reshape(num_chunks, W, Cout), axis=(0, 1))
    mean = s1c / cnt
    var = jnp.maximum(s2c / cnt - mean * mean, 0.0)
    scale = gamma.astype(jnp.float32) * jax.lax.rsqrt(var + EPS)
    bias = beta.astype(jnp.float32) - mean * scale
    scale_row = jnp.tile(scale, W).reshape(1, M)             # lane = w*Cout + co
    bias_row = jnp.tile(bias, W).reshape(1, M)

    # BN + ReLU in a single grid step over the whole tensor; the conv
    # accumulator buffer is aliased with the output (no extra HBM allocation).
    y2d = pl.pallas_call(
        _bn_relu_kernel,
        out_shape=jax.ShapeDtypeStruct((N, H, M), jnp.float32),
        grid=(1,),
        in_specs=[pl.BlockSpec((N, H, M), lambda i: (0, 0, 0)),
                  pl.BlockSpec((1, M), lambda i: (0, 0)),
                  pl.BlockSpec((1, M), lambda i: (0, 0))],
        out_specs=pl.BlockSpec((N, H, M), lambda i: (0, 0, 0)),
        input_output_aliases={0: 0},
    )(acc, scale_row, bias_row)

    y = y2d.reshape(N, H, W, Cout)                           # free row-major reshape
    return jnp.transpose(y, (0, 3, 1, 2))                    # back to NCHW


# ----------------------------------------------------------------------------
# Independent plain-JAX reference (XLA conv, f32 HIGHEST precision)
# ----------------------------------------------------------------------------
def decoder_block_reference(previous_nchw, skip_nchw, w_oihw, gamma, beta):
    prev = jnp.transpose(previous_nchw, (0, 2, 3, 1)).astype(jnp.float32)
    skip = jnp.transpose(skip_nchw, (0, 2, 3, 1)).astype(jnp.float32)
    up = upsample2x_bilinear_nhwc(prev)
    hu, wu = up.shape[1:3]
    skip = skip[:, :hu, :wu, :]
    x = jnp.concatenate([up, skip], axis=-1)
    w_hwio = jnp.transpose(w_oihw, (2, 3, 1, 0)).astype(jnp.float32)
    y = jax.lax.conv_general_dilated(
        x, w_hwio, window_strides=(1, 1), padding='SAME',
        dimension_numbers=('NHWC', 'HWIO', 'NHWC'),
        precision=jax.lax.Precision.HIGHEST)
    mean = jnp.mean(y, axis=(0, 1, 2), keepdims=True)
    var = jnp.mean((y - mean) ** 2, axis=(0, 1, 2), keepdims=True)
    y = (y - mean) * jax.lax.rsqrt(var + EPS) * gamma.reshape(1, 1, 1, -1) + beta.reshape(1, 1, 1, -1)
    y = jnp.maximum(y, 0.0)
    return jnp.transpose(y, (0, 3, 1, 2))


if __name__ == "__main__":
    key = jax.random.PRNGKey(0)
    k1, k2, k3, k4, k5 = jax.random.split(key, 5)

    # DecoderBlock(previous=4, skip=4, out=8, num_convs=1, norm=nn.BatchNorm2d)
    N, Cp, Cs, Cout = 2, 4, 4, 8
    H, W = 8, 8                       # `previous` spatial; `skip` is 2H x 2W

    previous = jax.random.normal(k1, (N, Cp, H, W), jnp.float32)
    skip = jax.random.normal(k2, (N, Cs, 2 * H, 2 * W), jnp.float32)

    # Deterministic synthetic parameters (shapes from __init__):
    #   Conv2d(Cp+Cs, Cout, 3, padding=1, bias=False) weight: (Cout, Cp+Cs, 3, 3)
    #   BatchNorm2d(Cout) weight/bias: (Cout,)
    w = 0.1 * jax.random.normal(k3, (Cout, Cp + Cs, 3, 3), jnp.float32)
    gamma = 1.0 + 0.1 * jax.random.normal(k4, (Cout,), jnp.float32)
    beta = 0.1 * jax.random.normal(k5, (Cout,), jnp.float32)

    out = decoder_block_forward(previous, skip, w, gamma, beta)
    out = jax.block_until_ready(out)

    ref = decoder_block_reference(previous, skip, w, gamma, beta)
    assert out.shape == (N, Cout, 2 * H, 2 * W)
    # Kernel uses native bf16 MXU operands with f32 accumulation; reference is
    # f32 HIGHEST-precision, so agreement is ~1e-2 level.
    np.testing.assert_allclose(np.asarray(out), np.asarray(ref), atol=2e-2, rtol=2e-2)

    print("KERNEL_OK")
</pallas_src>

<mosaic_0001>
module attributes {stable_mosaic.version = 11 : i64} {
  func.func @_conv_stats_kernel(%arg0: i32, %arg1: memref<2x16x128xbf16, #tpu.memory_space<vmem>>, %arg2: memref<384x128xbf16, #tpu.memory_space<vmem>>, %arg3: memref<2x16x128xf32, #tpu.memory_space<vmem>>, %arg4: memref<1x1x128xf32, #tpu.memory_space<vmem>>, %arg5: memref<1x1x128xf32, #tpu.memory_space<vmem>>) attributes {dimension_semantics = [#tpu.dimension_semantics<parallel>], iteration_bounds = array<i64: 1>, scalar_prefetch = 0 : i64, scratch_operands = 0 : i64, tpu.core_type = #tpu.core_type<tc>, window_params = [{transform_indices = @transform_0, window_bounds = array<i64: 2, 16, 128>}, {pipeline_mode = #tpu.pipeline_mode<synchronous>, transform_indices = @transform_1, window_bounds = array<i64: 384, 128>}, {transform_indices = @transform_2, window_bounds = array<i64: 2, 16, 128>}, {transform_indices = @transform_3, window_bounds = array<i64: 1, 1, 128>}, {transform_indices = @transform_4, window_bounds = array<i64: 1, 1, 128>}]} {
    %c0 = arith.constant 0 : index
    %c0_0 = arith.constant 0 : index
    %c0_1 = arith.constant 0 : index
    %0 = vector.load %arg1[%c0, %c0_0, %c0_1] : memref<2x16x128xbf16, #tpu.memory_space<vmem>>, vector<2x16x128xbf16>
    %cst = arith.constant 0.000000e+00 : bf16
    %1 = vector.broadcast %cst : bf16 to vector<2x1x128xbf16>
    %2 = vector.extract_strided_slice %0 {offsets = [0, 0, 0], sizes = [2, 15, 128], strides = [1, 1, 1]} : vector<2x16x128xbf16> to vector<2x15x128xbf16>
    %3 = tpu.concatenate %1, %2 in 1 : vector<2x1x128xbf16>, vector<2x15x128xbf16> -> vector<2x16x128xbf16>
    %4 = vector.extract_strided_slice %0 {offsets = [0, 1, 0], sizes = [2, 15, 128], strides = [1, 1, 1]} : vector<2x16x128xbf16> to vector<2x15x128xbf16>
    %5 = tpu.concatenate %4, %1 in 1 : vector<2x15x128xbf16>, vector<2x1x128xbf16> -> vector<2x16x128xbf16>
    %6 = tpu.concatenate %3, %0, %5 in 2 : vector<2x16x128xbf16>, vector<2x16x128xbf16>, vector<2x16x128xbf16> -> vector<2x16x384xbf16>
    %7 = vector.shape_cast %6 : vector<2x16x384xbf16> to vector<32x384xbf16>
    %c0_2 = arith.constant 0 : index
    %c0_3 = arith.constant 0 : index
    %8 = vector.load %arg2[%c0_2, %c0_3] : memref<384x128xbf16, #tpu.memory_space<vmem>>, vector<384x128xbf16>
    %cst_4 = arith.constant dense<0.000000e+00> : vector<32x128xf32>
    %9 = tpu.matmul %7, %8, %cst_4 {dimension_numbers = #tpu.dot_dimension_numbers<[1], [0], [0], [1], [0, 0, 1, 1], [], []>} : vector<32x384xbf16>, vector<384x128xbf16>, vector<32x128xf32> -> vector<32x128xf32>
    %10 = vector.shape_cast %9 : vector<32x128xf32> to vector<2x16x128xf32>
    %c0_5 = arith.constant 0 : index
    %c0_6 = arith.constant 0 : index
    %c0_7 = arith.constant 0 : index
    %11 = vector.load %arg3[%c0_5, %c0_6, %c0_7] : memref<2x16x128xf32, #tpu.memory_space<vmem>>, vector<2x16x128xf32>
    tpu.vector_store %arg3[%c0_5, %c0_6, %c0_7], %10 {strides = array<i32>} : memref<2x16x128xf32, #tpu.memory_space<vmem>>, vector<2x16x128xf32>,
    %cst_8 = arith.constant dense<0.000000e+00> : vector<128xf32>
    %12 = vector.multi_reduction <add>, %9, %cst_8 [0] : vector<32x128xf32> to vector<128xf32>
    %13 = vector.shape_cast %12 : vector<128xf32> to vector<1x128xf32>
    %14 = vector.shape_cast %13 : vector<1x128xf32> to vector<1x1x128xf32>
    %c0_9 = arith.constant 0 : index
    %c0_10 = arith.constant 0 : index
    %c0_11 = arith.constant 0 : index
    %15 = vector.load %arg4[%c0_9, %c0_10, %c0_11] : memref<1x1x128xf32, #tpu.memory_space<vmem>>, vector<1x1x128xf32>
    tpu.vector_store %arg4[%c0_9, %c0_10, %c0_11], %14 {strides = array<i32>} : memref<1x1x128xf32, #tpu.memory_space<vmem>>, vector<1x1x128xf32>,
    %16 = arith.mulf %9, %9 : vector<32x128xf32>
    %cst_12 = arith.constant dense<0.000000e+00> : vector<128xf32>
    %17 = vector.multi_reduction <add>, %16, %cst_12 [0] : vector<32x128xf32> to vector<128xf32>
    %18 = vector.shape_cast %17 : vector<128xf32> to vector<1x128xf32>
    %19 = vector.shape_cast %18 : vector<1x128xf32> to vector<1x1x128xf32>
    %c0_13 = arith.constant 0 : index
    %c0_14 = arith.constant 0 : index
    %c0_15 = arith.constant 0 : index
    %20 = vector.load %arg5[%c0_13, %c0_14, %c0_15] : memref<1x1x128xf32, #tpu.memory_space<vmem>>, vector<1x1x128xf32>
    tpu.vector_store %arg5[%c0_13, %c0_14, %c0_15], %19 {strides = array<i32>} : memref<1x1x128xf32, #tpu.memory_space<vmem>>, vector<1x1x128xf32>,
    return
  }
  func.func @transform_0(%arg0: i32) -> (i32, i32, i32) {
    %c0_i32 = arith.constant 0 : i32
    %c0_i32_0 = arith.constant 0 : i32
    %c0_i32_1 = arith.constant 0 : i32
    return %arg0, %c0_i32, %c0_i32_0 : i32, i32, i32
  }
  func.func @transform_1(%arg0: i32) -> (i32, i32) {
    %c0_i32 = arith.constant 0 : i32
    %c0_i32_0 = arith.constant 0 : i32
    %c0_i32_1 = arith.constant 0 : i32
    return %c0_i32, %c0_i32_0 : i32, i32
  }
  func.func @transform_2(%arg0: i32) -> (i32, i32, i32) {
    %c0_i32 = arith.constant 0 : i32
    %c0_i32_0 = arith.constant 0 : i32
    %c0_i32_1 = arith.constant 0 : i32
    return %arg0, %c0_i32, %c0_i32_0 : i32, i32, i32
  }
  func.func @transform_3(%arg0: i32) -> (i32, i32, i32) {
    %c0_i32 = arith.constant 0 : i32
    %c0_i32_0 = arith.constant 0 : i32
    %c0_i32_1 = arith.constant 0 : i32
    return %arg0, %c0_i32, %c0_i32_0 : i32, i32, i32
  }
  func.func @transform_4(%arg0: i32) -> (i32, i32, i32) {
    %c0_i32 = arith.constant 0 : i32
    %c0_i32_0 = arith.constant 0 : i32
    %c0_i32_1 = arith.constant 0 : i32
    return %arg0, %c0_i32, %c0_i32_0 : i32, i32, i32
  }
}

module attributes {stable_mosaic.version = 11 : i64} {
  func.func @_bn_relu_kernel(%arg0: i32, %arg1: memref<2x16x128xf32, #tpu.memory_space<vmem>>, %arg2: memref<1x128xf32, #tpu.memory_space<vmem>>, %arg3: memref<1x128xf32, #tpu.memory_space<vmem>>, %arg4: memref<2x16x128xf32, #tpu.memory_space<vmem>>) attributes {dimension_semantics = [#tpu.dimension_semantics<arbitrary>], iteration_bounds = array<i64: 1>, scalar_prefetch = 0 : i64, scratch_operands = 0 : i64, tpu.core_type = #tpu.core_type<tc>, window_params = [{pipeline_mode = #tpu.pipeline_mode<synchronous>, transform_indices = @transform_0, window_bounds = array<i64: 2, 16, 128>}, {pipeline_mode = #tpu.pipeline_mode<synchronous>, transform_indices = @transform_1, window_bounds = array<i64: 1, 128>}, {pipeline_mode = #tpu.pipeline_mode<synchronous>, transform_indices = @transform_2, window_bounds = array<i64: 1, 128>}, {pipeline_mode = #tpu.pipeline_mode<synchronous>, transform_indices = @transform_3, window_bounds = array<i64: 2, 16, 128>}]} {
    %c0 = arith.constant 0 : index
    %c0_0 = arith.constant 0 : index
    %c0_1 = arith.constant 0 : index
    %0 = vector.load %arg1[%c0, %c0_0, %c0_1] : memref<2x16x128xf32, #tpu.memory_space<vmem>>, vector<2x16x128xf32>
    %c0_2 = arith.constant 0 : index
    %c0_3 = arith.constant 0 : index
    %1 = vector.load %arg2[%c0_2, %c0_3] : memref<1x128xf32, #tpu.memory_space<vmem>>, vector<1x128xf32>
    %2 = vector.shape_cast %1 : vector<1x128xf32> to vector<1x1x128xf32>
    %c0_4 = arith.constant 0 : index
    %c0_5 = arith.constant 0 : index
    %3 = vector.load %arg3[%c0_4, %c0_5] : memref<1x128xf32, #tpu.memory_space<vmem>>, vector<1x128xf32>
    %4 = vector.shape_cast %3 : vector<1x128xf32> to vector<1x1x128xf32>
    %5 = vector.broadcast %2 : vector<1x1x128xf32> to vector<2x16x128xf32>
    %6 = arith.mulf %0, %5 : vector<2x16x128xf32>
    %7 = vector.broadcast %4 : vector<1x1x128xf32> to vector<2x16x128xf32>
    %8 = arith.addf %6, %7 : vector<2x16x128xf32>
    %cst = arith.constant 0.000000e+00 : f32
    %9 = vector.broadcast %cst : f32 to vector<2x16x128xf32>
    %10 = arith.maximumf %8, %9 : vector<2x16x128xf32>
    %c0_6 = arith.constant 0 : index
    %c0_7 = arith.constant 0 : index
    %c0_8 = arith.constant 0 : index
    %11 = vector.load %arg4[%c0_6, %c0_7, %c0_8] : memref<2x16x128xf32, #tpu.memory_space<vmem>>, vector<2x16x128xf32>
    tpu.vector_store %arg4[%c0_6, %c0_7, %c0_8], %10 {strides = array<i32>} : memref<2x16x128xf32, #tpu.memory_space<vmem>>, vector<2x16x128xf32>,
    return
  }
  func.func @transform_0(%arg0: i32) -> (i32, i32, i32) {
    %c0_i32 = arith.constant 0 : i32
    %c0_i32_0 = arith.constant 0 : i32
    %c0_i32_1 = arith.constant 0 : i32
    %c0_i32_2 = arith.constant 0 : i32
    return %c0_i32, %c0_i32_0, %c0_i32_1 : i32, i32, i32
  }
  func.func @transform_1(%arg0: i32) -> (i32, i32) {
    %c0_i32 = arith.constant 0 : i32
    %c0_i32_0 = arith.constant 0 : i32
    %c0_i32_1 = arith.constant 0 : i32
    return %c0_i32, %c0_i32_0 : i32, i32
  }
  func.func @transform_2(%arg0: i32) -> (i32, i32) {
    %c0_i32 = arith.constant 0 : i32
    %c0_i32_0 = arith.constant 0 : i32
    %c0_i32_1 = arith.constant 0 : i32
    return %c0_i32, %c0_i32_0 : i32, i32
  }
  func.func @transform_3(%arg0: i32) -> (i32, i32, i32) {
    %c0_i32 = arith.constant 0 : i32
    %c0_i32_0 = arith.constant 0 : i32
    %c0_i32_1 = arith.constant 0 : i32
    %c0_i32_2 = arith.constant 0 : i32
    return %c0_i32, %c0_i32_0, %c0_i32_1 : i32, i32, i32
  }
}

</mosaic_0001>

<llo_original>
// kernel: tile.18
$region0: #{tile.18}
  #allocation0 [shape = 's32[1]{0}', space=sflag, size = 0x4, scoped, tag = 'scoped memory for tile.18']
  %s0 = inlined_call_operand.vmem [shape: f32[8], index: 0, kind: input, shape index: {}]
  %s1 = inlined_call_operand.vmem [shape: f32[16,8], index: 1, kind: output, shape index: {}]
  // Predicated region
  $region2: #{tile.18} parent=0 // pred_check
    _
  $region3: #{tile.18} parent=0 // pred_check_branch
    %3 = sbr.rel (0) target = $region5
  $region4: #{tile.18} parent=0 // pred_region
    _
  $region5: #{tile.18} parent=0 // pred_fallthru
    _
  %v4 = vld [vmem:[%s0] ss:$0 sm:$0xff]
  %5 = vst [vmem:[%s1] sm:$0xff] %v4
  %s6 = scalar_lea.vmem %s1, 8
  %7 = vst [vmem:[%s6] sm:$0xff] %v4

// kernel: tile.19
$region0: #{tile.19}
  %s0 = inlined_call_operand.vmem [shape: f32[16,8], index: 0, kind: input, shape index: {}]
  %s1 = inlined_call_operand.vmem [shape: f32[1,128], index: 1, kind: output, shape index: {}]
  $region1: #{tile.19} parent=0
    #allocation0 [shape = 'u8[4096]{0}', space=vmem, size = 0x1000, scoped, tag = 'scoped mem for output reshape']
    %v2 = vld [vmem:[%s0] sm:$0x1]
    %vm3 = vcmask 64512
    %4 = vst.msk [vmem:[#allocation0] sm:$0x1] %vm3, %v2
    %s5 = scalar_lea.vmem %s0, 15
    %v6 = vld [vmem:[%s5] sm:$0x1]
    %7 = vrot.lane.b32.xlu0 %v6, 120
    %v8 = vpop.permute.xlu0 %7
    %vm9 = vcmask 1048512
    %10 = vst.msk [vmem:[#allocation0] sm:$0x1] %vm9, %v8
    %s11 = scalar_lea.vmem %s0, 14
    %v12 = vld [vmem:[%s11] sm:$0x1]
    %13 = vrot.lane.b32.xlu0 %v12, 112
    %v14 = vpop.permute.xlu0 %13
    %vm15 = vcmask 982912
    %16 = vst.msk [vmem:[#allocation0] sm:$0x1] %vm15, %v14
    %s17 = scalar_lea.vmem %s0, 13
    %v18 = vld [vmem:[%s17] sm:$0x1]
    %19 = vrot.lane.b32.xlu0 %v18, 104
    %v20 = vpop.permute.xlu0 %19
    %vm21 = vcmask 917312
    %22 = vst.msk [vmem:[#allocation0] sm:$0x1] %vm21, %v20
    %s23 = scalar_lea.vmem %s0, 12
    %v24 = vld [vmem:[%s23] sm:$0x1]
    %25 = vrot.lane.b32.xlu0 %v24, 96
    %v26 = vpop.permute.xlu0 %25
    %vm27 = vcmask 851712
    %28 = vst.msk [vmem:[#allocation0] sm:$0x1] %vm27, %v26
    %s29 = scalar_lea.vmem %s0, 11
    %v30 = vld [vmem:[%s29] sm:$0x1]
    %31 = vrot.lane.b32.xlu0 %v30, 88
    %v32 = vpop.permute.xlu0 %31
    %vm33 = vcmask 786112
    %34 = vst.msk [vmem:[#allocation0] sm:$0x1] %vm33, %v32
    %s35 = scalar_lea.vmem %s0, 10
    %v36 = vld [vmem:[%s35] sm:$0x1]
    %37 = vrot.lane.b32.xlu0 %v36, 80
    %v38 = vpop.permute.xlu0 %37
    %vm39 = vcmask 720512
    %40 = vst.msk [vmem:[#allocation0] sm:$0x1] %vm39, %v38
    %s41 = scalar_lea.vmem %s0, 9
    %v42 = vld [vmem:[%s41] sm:$0x1]
    %43 = vrot.lane.b32.xlu0 %v42, 72
    %v44 = vpop.permute.xlu0 %43
    %vm45 = vcmask 654912
    %46 = vst.msk [vmem:[#allocation0] sm:$0x1] %vm45, %v44
    %s47 = scalar_lea.vmem %s0, 8
    %v48 = vld [vmem:[%s47] sm:$0x1]
    %49 = vrot.lane.b32.xlu0 %v48, 64
    %v50 = vpop.permute.xlu0 %49
    %vm51 = vcmask 589312
    %52 = vst.msk [vmem:[#allocation0] sm:$0x1] %vm51, %v50
    %s53 = scalar_lea.vmem %s0, 7
    %v54 = vld [vmem:[%s53] sm:$0x1]
    %55 = vrot.lane.b32.xlu0 %v54, 56
    %v56 = vpop.permute.xlu0 %55
    %vm57 = vcmask 523712
    %58 = vst.msk [vmem:[#allocation0] sm:$0x1] %vm57, %v56
    %s59 = scalar_lea.vmem %s0, 6
    %v60 = vld [vmem:[%s59] sm:$0x1]
    %61 = vrot.lane.b32.xlu0 %v60, 48
    %v62 = vpop.permute.xlu0 %61
    %vm63 = vcmask 458112
    %64 = vst.msk [vmem:[#allocation0] sm:$0x1] %vm63, %v62
    %s65 = scalar_lea.vmem %s0, 5
    %v66 = vld [vmem:[%s65] sm:$0x1]
    %67 = vrot.lane.b32.xlu0 %v66, 40
    %v68 = vpop.permute.xlu0 %67
    %vm69 = vcmask 392512
    %70 = vst.msk [vmem:[#allocation0] sm:$0x1] %vm69, %v68
    %s71 = scalar_lea.vmem %s0, 4
    %v72 = vld [vmem:[%s71] sm:$0x1]
    %73 = vrot.lane.b32.xlu0 %v72, 32
    %v74 = vpop.permute.xlu0 %73
    %vm75 = vcmask 326912
    %76 = vst.msk [vmem:[#allocation0] sm:$0x1] %vm75, %v74
    %s77 = scalar_lea.vmem %s0, 3
    %v78 = vld [vmem:[%s77] sm:$0x1]
    %79 = vrot.lane.b32.xlu0 %v78, 24
    %v80 = vpop.permute.xlu0 %79
    %vm81 = vcmask 261312
    %82 = vst.msk [vmem:[#allocation0] sm:$0x1] %vm81, %v80
    %s83 = scalar_lea.vmem %s0, 2
    %v84 = vld [vmem:[%s83] sm:$0x1]
    %85 = vrot.lane.b32.xlu0 %v84, 16
    %v86 = vpop.permute.xlu0 %85
    %vm87 = vcmask 195712
    %88 = vst.msk [vmem:[#allocation0] sm:$0x1] %vm87, %v86
    %s89 = scalar_lea.vmem %s0, 1
    %v90 = vld [vmem:[%s89] sm:$0x1]
    %91 = vrot.lane.b32.xlu0 %v90, 8
    %v92 = vpop.permute.xlu0 %91
    %vm93 = vcmask 130112
    %94 = vst.msk [vmem:[#allocation0] sm:$0x1] %vm93, %v92
    %s96 = sshllo.u32 0, 1
    %v98 = vld [vmem:[#allocation0] sm:%s96]
    %s99 = sshllo.u32 0, 1
    %100 = vst [vmem:[%s1] sm:%s99] %v98

// kernel: decoder_block_forward.3
$region0: #{decoder_block_forward.3}
  #allocation0 [shape = 'u32[]', space=smem, size = 0x4, offset = 0x4, fixed_abs, tag = 'smem constant byte address 0x4 - core index']
  #allocation1 [shape = 'u32[144,128]{1,0:T(1,128)}', space=vmem, size = 0x12000, scoped, tag = 'internal scratch']
  %s0 = inlined_call_operand.vmem [shape: f32[2,16,128], index: 0, kind: input, shape index: {}, may-alias: {0,3}]
  %s1 = inlined_call_operand.vmem [shape: f32[1,128], index: 1, kind: input, shape index: {}]
  %s2 = inlined_call_operand.vmem [shape: f32[1,128], index: 2, kind: input, shape index: {}]
  %s3 = inlined_call_operand.vmem [shape: f32[2,16,128], index: 3, kind: output, shape index: {}, may-alias: {0,3}]
  %s4 = sld [smem:[#allocation0]]
  $region22: #{decoder_block_forward.3} parent=0
    _
  %s6 = ssub.s32 1, %s4
  %s7 = scalar_select 0, %s6, %s4
  // Predicated region
  $region2: #{decoder_block_forward.3} parent=0 // pred_check
    _
  $region3: #{decoder_block_forward.3} parent=0 // pred_check_branch
    %9 = sbr.rel (0) target = $region5
  $region4: #{decoder_block_forward.3} parent=0 // pred_region
    _
  $region5: #{decoder_block_forward.3} parent=0 // pred_fallthru
    _
  // Predicated region
  $region6: #{decoder_block_forward.3} parent=0 // pred_check
    _
  $region7: #{decoder_block_forward.3} parent=0 // pred_check_branch
    %11 = sbr.rel (0) target = $region9
  $region8: #{decoder_block_forward.3} parent=0 // pred_region
    _
  $region9: #{decoder_block_forward.3} parent=0 // pred_fallthru
    _
  // Predicated region
  $region10: #{decoder_block_forward.3} parent=0 // pred_check
    _
  $region11: #{decoder_block_forward.3} parent=0 // pred_check_branch
    %13 = sbr.rel (0) target = $region13
  $region12: #{decoder_block_forward.3} parent=0 // pred_region
    _
  $region13: #{decoder_block_forward.3} parent=0 // pred_fallthru
    _
  %v14 = vld [vmem:[%s0] sm:$0xff]
  %v15 = vld [vmem:[%s0 + $0x8] sm:$0xff]
  %v16 = vld [vmem:[%s0 + $0x10] sm:$0xff]
  %v17 = vld [vmem:[%s0 + $0x18] sm:$0xff]
  %v18 = vld [vmem:[%s1] sm:$0x1]
  %v19 = vld [vmem:[%s2] sm:$0x1]
  %v21 = vlaneseq
  %v22 = vshrl.u32 %v21, 7
  %v23 = vsub.s32 0, %v22
  %v24 = vrot.slane %v18, %v23
  %v26 = vmul.f32 %v14, %v24
  %v27 = vmul.f32 %v15, %v24
  %v28 = vmul.f32 %v16, %v24
  %v29 = vmul.f32 %v17, %v24
  %v31 = vlaneseq
  %v32 = vshrl.u32 %v31, 7
  %v33 = vsub.s32 0, %v32
  %v34 = vrot.slane %v19, %v33
  %v36 = vadd.f32 %v26, %v34
  %v37 = vadd.f32 %v27, %v34
  %v38 = vadd.f32 %v28, %v34
  %v39 = vadd.f32 %v29, %v34
  %v40 = vmax.f32 %v36, 0.0
  %v41 = vmax.f32 %v37, 0.0
  %v42 = vmax.f32 %v38, 0.0
  %v43 = vmax.f32 %v39, 0.0
  %44 = vst [vmem:[%s3] sm:$0xff] %v40
  %45 = vst [vmem:[%s3 + $0x8] sm:$0xff] %v41
  %46 = vst [vmem:[%s3 + $0x10] sm:$0xff] %v42
  %47 = vst [vmem:[%s3 + $0x18] sm:$0xff] %v43
  // Predicated region
  $region14: #{decoder_block_forward.3} parent=0 // pred_check
    _
  $region15: #{decoder_block_forward.3} parent=0 // pred_check_branch
    %49 = sbr.rel (0) target = $region17
  $region16: #{decoder_block_forward.3} parent=0 // pred_region
    _
  $region17: #{decoder_block_forward.3} parent=0 // pred_fallthru
    _
  // Predicated region
  $region18: #{decoder_block_forward.3} parent=0 // pred_check
    _
  $region19: #{decoder_block_forward.3} parent=0 // pred_check_branch
    %51 = sbr.rel (0) target = $region21
  $region20: #{decoder_block_forward.3} parent=0 // pred_region
    _
  $region21: #{decoder_block_forward.3} parent=0 // pred_fallthru
    _

// kernel: decoder_block_forward.2
$region0: #{decoder_block_forward.2}
  #allocation0 [shape = 'u32[]', space=smem, size = 0x4, offset = 0x4, fixed_abs, tag = 'smem constant byte address 0x4 - core index']
  #allocation1 [shape = 'u32[144,128]{1,0:T(1,128)}', space=vmem, size = 0x12000, scoped, tag = 'internal scratch']
  %s0 = inlined_call_operand.vmem [shape: bf16[2,16,128], index: 0, kind: input, shape index: {}]
  %s1 = inlined_call_operand.vmem [shape: bf16[384,128], index: 1, kind: input, shape index: {}]
  %s2 = inlined_call_operand.vmem [shape: f32[2,16,128], index: 2, kind: output, shape index: {0}]
  %s3 = inlined_call_operand.vmem [shape: f32[1,1,128], index: 3, kind: output, shape index: {1}]
  %s4 = inlined_call_operand.vmem [shape: f32[1,1,128], index: 4, kind: output, shape index: {2}]
  %5 = xla_tuple %s2, %s3, %s4
  %s6 = sld [smem:[#allocation0]]
  $region34: #{decoder_block_forward.2} parent=0
    _
  %s8 = ssub.s32 1, %s6
  %s9 = scalar_select 0, %s8, %s6
  // Predicated region
  $region2: #{decoder_block_forward.2} parent=0 // pred_check
    _
  $region3: #{decoder_block_forward.2} parent=0 // pred_check_branch
    %11 = sbr.rel (0) target = $region5
  $region4: #{decoder_block_forward.2} parent=0 // pred_region
    _
  $region5: #{decoder_block_forward.2} parent=0 // pred_fallthru
    _
  // Predicated region
  $region6: #{decoder_block_forward.2} parent=0 // pred_check
    _
  $region7: #{decoder_block_forward.2} parent=0 // pred_check_branch
    %13 = sbr.rel (0) target = $region9
  $region8: #{decoder_block_forward.2} parent=0 // pred_region
    _
  $region9: #{decoder_block_forward.2} parent=0 // pred_fallthru
    _
  %v15 = vld [vmem:[%s0] sm:$0xf]
  %v16 = vld [vmem:[%s0 + $0x4] sm:$0xf]
  %v17 = vld [vmem:[%s0 + $0x8] sm:$0xf]
  %v18 = vld [vmem:[%s0 + $0xc] sm:$0xf]
  %v23 = vunpack.c.l.b16 %v15
  %v24 = vunpack.c.l.b16 %v16
  %v25 = vunpack.c.l.b16 %v17
  %v26 = vunpack.c.l.b16 %v18
  %v27 = vpack.c.b16 %v24, %v23
  %v28 = vpack.c.b16 %v26, %v25
  %v30 = vshrl.u32 %v27, 16
  %v32 = vrot.slane %v30, 7
  %v33 = vshll.u32 %v27, 16
  %v35 = vor.u32 %v32, %v33
  %v37 = vshrl.u32 %v28, 16
  %v39 = vrot.slane %v37, 7
  %v40 = vshll.u32 %v28, 16
  %v42 = vor.u32 %v39, %v40
  %vm45 = vcmask 1040384
  %vm46 = vsmask.f32 256
  %vm47 = vmand %vm45, %vm46
  %v48 = vsel %vm47, 0, %v35
  %v49 = vsel %vm47, 0, %v42
  %v50 = vrot.slane %v33, 1
  %v51 = vor.u32 %v30, %v50
  %v52 = vrot.slane %v40, 1
  %v53 = vor.u32 %v37, %v52
  %vm56 = vcmask 1047552
  %vm57 = vsmask.f32 7424
  %vm58 = vmand %vm56, %vm57
  %v59 = vsel %vm58, %v51, 0
  %v60 = vsel %vm58, %v53, 0
  %v63 = vld [vmem:[%s1] sm:$0xf]
  %v64 = vld [vmem:[%s1 + $0x4] sm:$0xf]
  %v65 = vld [vmem:[%s1 + $0x8] sm:$0xf]
  %v66 = vld [vmem:[%s1 + $0xc] sm:$0xf]
  %v67 = vld [vmem:[%s1 + $0x10] sm:$0xf]
  %v68 = vld [vmem:[%s1 + $0x14] sm:$0xf]
  %v69 = vld [vmem:[%s1 + $0x18] sm:$0xf]
  %v70 = vld [vmem:[%s1 + $0x1c] sm:$0xf]
  %v71 = vld [vmem:[%s1 + $0x20] sm:$0xf]
  %v72 = vld [vmem:[%s1 + $0x24] sm:$0xf]
  %v73 = vld [vmem:[%s1 + $0x28] sm:$0xf]
  %v74 = vld [vmem:[%s1 + $0x2c] sm:$0xf]
  %v75 = vld [vmem:[%s1 + $0x30] sm:$0xf]
  %v76 = vld [vmem:[%s1 + $0x34] sm:$0xf]
  %v77 = vld [vmem:[%s1 + $0x38] sm:$0xf]
  %v78 = vld [vmem:[%s1 + $0x3c] sm:$0xf]
  %v79 = vld [vmem:[%s1 + $0x40] sm:$0xf]
  %v80 = vld [vmem:[%s1 + $0x44] sm:$0xf]
  %v81 = vld [vmem:[%s1 + $0x48] sm:$0xf]
  %v82 = vld [vmem:[%s1 + $0x4c] sm:$0xf]
  %v83 = vld [vmem:[%s1 + $0x50] sm:$0xf]
  %v84 = vld [vmem:[%s1 + $0x54] sm:$0xf]
  %v85 = vld [vmem:[%s1 + $0x58] sm:$0xf]
  %v86 = vld [vmem:[%s1 + $0x5c] sm:$0xf]
  %v87 = vld [vmem:[%s1 + $0x60] sm:$0xf]
  %v88 = vld [vmem:[%s1 + $0x64] sm:$0xf]
  %v89 = vld [vmem:[%s1 + $0x68] sm:$0xf]
  %v90 = vld [vmem:[%s1 + $0x6c] sm:$0xf]
  %v91 = vld [vmem:[%s1 + $0x70] sm:$0xf]
  %v92 = vld [vmem:[%s1 + $0x74] sm:$0xf]
  %v93 = vld [vmem:[%s1 + $0x78] sm:$0xf]
  %v94 = vld [vmem:[%s1 + $0x7c] sm:$0xf]
  %v95 = vld [vmem:[%s1 + $0x80] sm:$0xf]
  %v96 = vld [vmem:[%s1 + $0x84] sm:$0xf]
  %v97 = vld [vmem:[%s1 + $0x88] sm:$0xf]
  %v98 = vld [vmem:[%s1 + $0x8c] sm:$0xf]
  %v99 = vld [vmem:[%s1 + $0x90] sm:$0xf]
  %v100 = vld [vmem:[%s1 + $0x94] sm:$0xf]
  %v101 = vld [vmem:[%s1 + $0x98] sm:$0xf]
  %v102 = vld [vmem:[%s1 + $0x9c] sm:$0xf]
  %v103 = vld [vmem:[%s1 + $0xa0] sm:$0xf]
  %v104 = vld [vmem:[%s1 + $0xa4] sm:$0xf]
  %v105 = vld [vmem:[%s1 + $0xa8] sm:$0xf]
  %v106 = vld [vmem:[%s1 + $0xac] sm:$0xf]
  %v107 = vld [vmem:[%s1 + $0xb0] sm:$0xf]
  %v108 = vld [vmem:[%s1 + $0xb4] sm:$0xf]
  %v109 = vld [vmem:[%s1 + $0xb8] sm:$0xf]
  %v110 = vld [vmem:[%s1 + $0xbc] sm:$0xf]
  %v159 = vunpack.c.l.b16 %v63
  %v160 = vunpack.c.l.b16 %v64
  %v161 = vunpack.c.l.b16 %v65
  %v162 = vunpack.c.l.b16 %v66
  %v163 = vunpack.c.l.b16 %v67
  %v164 = vunpack.c.l.b16 %v68
  %v165 = vunpack.c.l.b16 %v69
  %v166 = vunpack.c.l.b16 %v70
  %v167 = vunpack.c.l.b16 %v71
  %v168 = vunpack.c.l.b16 %v72
  %v169 = vunpack.c.l.b16 %v73
  %v170 = vunpack.c.l.b16 %v74
  %v171 = vunpack.c.l.b16 %v75
  %v172 = vunpack.c.l.b16 %v76
  %v173 = vunpack.c.l.b16 %v77
  %v174 = vunpack.c.l.b16 %v78
  %v175 = vunpack.c.l.b16 %v79
  %v176 = vunpack.c.l.b16 %v80
  %v177 = vunpack.c.l.b16 %v81
  %v178 = vunpack.c.l.b16 %v82
  %v179 = vunpack.c.l.b16 %v83
  %v180 = vunpack.c.l.b16 %v84
  %v181 = vunpack.c.l.b16 %v85
  %v182 = vunpack.c.l.b16 %v86
  %v183 = vunpack.c.l.b16 %v87
  %v184 = vunpack.c.l.b16 %v88
  %v185 = vunpack.c.l.b16 %v89
  %v186 = vunpack.c.l.b16 %v90
  %v187 = vunpack.c.l.b16 %v91
  %v188 = vunpack.c.l.b16 %v92
  %v189 = vunpack.c.l.b16 %v93
  %v190 = vunpack.c.l.b16 %v94
  %v191 = vunpack.c.l.b16 %v95
  %v192 = vunpack.c.l.b16 %v96
  %v193 = vunpack.c.l.b16 %v97
  %v194 = vunpack.c.l.b16 %v98
  %v195 = vunpack.c.l.b16 %v99
  %v196 = vunpack.c.l.b16 %v100
  %v197 = vunpack.c.l.b16 %v101
  %v198 = vunpack.c.l.b16 %v102
  %v199 = vunpack.c.l.b16 %v103
  %v200 = vunpack.c.l.b16 %v104
  %v201 = vunpack.c.l.b16 %v105
  %v202 = vunpack.c.l.b16 %v106
  %v203 = vunpack.c.l.b16 %v107
  %v204 = vunpack.c.l.b16 %v108
  %v205 = vunpack.c.l.b16 %v109
  %v206 = vunpack.c.l.b16 %v110
  %v207 = vpack.c.b16 %v160, %v159
  %v208 = vpack.c.b16 %v162, %v161
  %v209 = vpack.c.b16 %v164, %v163
  %v210 = vpack.c.b16 %v166, %v165
  %v211 = vpack.c.b16 %v168, %v167
  %v212 = vpack.c.b16 %v170, %v169
  %v213 = vpack.c.b16 %v172, %v171
  %v214 = vpack.c.b16 %v174, %v173
  %v215 = vpack.c.b16 %v176, %v175
  %v216 = vpack.c.b16 %v178, %v177
  %v217 = vpack.c.b16 %v180, %v179
  %v218 = vpack.c.b16 %v182, %v181
  %v219 = vpack.c.b16 %v184, %v183
  %v220 = vpack.c.b16 %v186, %v185
  %v221 = vpack.c.b16 %v188, %v187
  %v222 = vpack.c.b16 %v190, %v189
  %v223 = vpack.c.b16 %v192, %v191
  %v224 = vpack.c.b16 %v194, %v193
  %v225 = vpack.c.b16 %v196, %v195
  %v226 = vpack.c.b16 %v198, %v197
  %v227 = vpack.c.b16 %v200, %v199
  %v228 = vpack.c.b16 %v202, %v201
  %v229 = vpack.c.b16 %v204, %v203
  %v230 = vpack.c.b16 %v206, %v205
  %255 = vmatprep.subr.bf16.mxu0 0
  %256 = vmatpush1.bf16.msra.mxu0 %v207
  %257 = vmatprep.subr.bf16.mxu0 0
  %258 = vmatpush1.bf16.msra.mxu0 %v208
  %259 = vmatprep.subr.bf16.mxu0 0
  %260 = vmatpush1.bf16.msra.mxu0 %v209
  %261 = vmatprep.subr.bf16.mxu0 0
  %262 = vmatpush1.bf16.msra.mxu0 %v210
  %263 = vmatprep.subr.bf16.mxu0 0
  %264 = vmatpush1.bf16.msra.mxu0 %v211
  %265 = vmatprep.subr.bf16.mxu0 0
  %266 = vmatpush1.bf16.msra.mxu0 %v212
  %267 = vmatprep.subr.bf16.mxu0 0
  %268 = vmatpush1.bf16.msra.mxu0 %v213
  %269 = vmatprep.subr.bf16.mxu0 0
  %270 = vmatpush1.bf16.msra.mxu0 %v214
  %271 = vmatprep.subr.bf16.mxu0 0
  %272 = vmatpush1.bf16.msra.mxu0 %v215
  %273 = vmatprep.subr.bf16.mxu0 0
  %274 = vmatpush1.bf16.msra.mxu0 %v216
  %275 = vmatprep.subr.bf16.mxu0 0
  %276 = vmatpush1.bf16.msra.mxu0 %v217
  %277 = vmatprep.subr.bf16.mxu0 0
  %278 = vmatpush1.bf16.msra.mxu0 %v218
  %279 = vmatprep.subr.bf16.mxu0 0
  %280 = vmatpush1.bf16.msra.mxu0 %v219
  %281 = vmatprep.subr.bf16.mxu0 0
  %282 = vmatpush1.bf16.msra.mxu0 %v220
  %283 = vmatprep.subr.bf16.mxu0 0
  %284 = vmatpush1.bf16.msra.mxu0 %v221
  %285 = vmatprep.subr.bf16.mxu0 0
  %286 = vmatpush1.bf16.msra.mxu0 %v222
  %287 = vmatprep.mubr.bf16.mxu0 %v27
  %288 = vmatmul.mubr.bf16.gmra.mrb[0].mxu0 %v48
  %v289 = vpop.f32.mrb[0].mxu0
  %v290 = vadd.f32 0.0, %v289
  %v291 = vpop.f32.mrb[0].mxu0
  %v292 = vpop.f32.mrb[0].mxu0
  %v293 = vadd.f32 0.0, %v292
  %v294 = vpop.f32.mrb[0].mxu0
  %295 = vmatprep.mubr.bf16.mxu0 %v28
  %296 = vmatmul.mubr.bf16.gmra.mrb[0].mxu0 %v49
  %v297 = vpop.f32.mrb[0].mxu0
  %v298 = vadd.f32 0.0, %v297
  %v299 = vpop.f32.mrb[0].mxu0
  %v300 = vpop.f32.mrb[0].mxu0
  %v301 = vadd.f32 0.0, %v300
  %v302 = vpop.f32.mrb[0].mxu0
  %303 = vdwg.mxu0
  %304 = vmatprep.subr.bf16.mxu0 0
  %305 = vmatpush1.bf16.msra.mxu0 %v223
  %306 = vmatprep.subr.bf16.mxu0 0
  %307 = vmatpush1.bf16.msra.mxu0 %v224
  %308 = vmatprep.subr.bf16.mxu0 0
  %309 = vmatpush1.bf16.msra.mxu0 %v225
  %310 = vmatprep.subr.bf16.mxu0 0
  %311 = vmatpush1.bf16.msra.mxu0 %v226
  %312 = vmatprep.subr.bf16.mxu0 0
  %313 = vmatpush1.bf16.msra.mxu0 %v227
  %314 = vmatprep.subr.bf16.mxu0 0
  %315 = vmatpush1.bf16.msra.mxu0 %v228
  %316 = vmatprep.subr.bf16.mxu0 0
  %317 = vmatpush1.bf16.msra.mxu0 %v229
  %318 = vmatprep.subr.bf16.mxu0 0
  %319 = vmatpush1.bf16.msra.mxu0 %v230
  %320 = vmatprep.subr.bf16.mxu0 0
  %321 = vmatpush1.bf16.msra.mxu0 0
  %322 = vmatprep.subr.bf16.mxu0 0
  %323 = vmatpush1.bf16.msra.mxu0 0
  %324 = vmatprep.subr.bf16.mxu0 0
  %325 = vmatpush1.bf16.msra.mxu0 0
  %326 = vmatprep.subr.bf16.mxu0 0
  %327 = vmatpush1.bf16.msra.mxu0 0
  %328 = vmatprep.subr.bf16.mxu0 0
  %329 = vmatpush1.bf16.msra.mxu0 0
  %330 = vmatprep.subr.bf16.mxu0 0
  %331 = vmatpush1.bf16.msra.mxu0 0
  %332 = vmatprep.subr.bf16.mxu0 0
  %333 = vmatpush1.bf16.msra.mxu0 0
  %334 = vmatprep.subr.bf16.mxu0 0
  %335 = vmatpush1.bf16.msra.mxu0 0
  %336 = vmatprep.mubr.bf16.mxu0 0
  %337 = vmatmul.mubr.bf16.gmra.mrb[0].mxu0 %v59
  %v338 = vpop.f32.mrb[0].mxu0
  %v339 = vadd.f32 %v290, %v338
  %v340 = vpop.f32.mrb[0].mxu0
  %v341 = vpop.f32.mrb[0].mxu0
  %v342 = vadd.f32 %v293, %v341
  %v343 = vpop.f32.mrb[0].mxu0
  %344 = vmatprep.mubr.bf16.mxu0 0
  %345 = vmatmul.mubr.bf16.gmra.mrb[0].mxu0 %v60
  %v346 = vpop.f32.mrb[0].mxu0
  %v347 = vadd.f32 %v298, %v346
  %v348 = vpop.f32.mrb[0].mxu0
  %v349 = vpop.f32.mrb[0].mxu0
  %v350 = vadd.f32 %v301, %v349
  %v351 = vpop.f32.mrb[0].mxu0
  %352 = vdwg.mxu0
  %353 = vst [vmem:[%s2] sm:$0xff] %v339
  %354 = vst [vmem:[%s2 + $0x8] sm:$0xff] %v342
  %355 = vst [vmem:[%s2 + $0x10] sm:$0xff] %v347
  %356 = vst [vmem:[%s2 + $0x18] sm:$0xff] %v350
  %v357 = vadd.f32 %v339, %v342
  %v358 = vadd.f32 %v357, %v347
  %v359 = vadd.f32 %v358, %v350
  %v360 = vrot.slane %v359, 4
  %v361 = vadd.f32 %v359, %v360
  %v362 = vrot.slane %v361, 2
  %v363 = vadd.f32 %v361, %v362
  %v364 = vrot.slane %v363, 1
  %v365 = vadd.f32 %v363, %v364
  %366 = vst [vmem:[%s3] sm:$0x1] %v365
  %v367 = vmul.f32 %v339, %v339
  %v368 = vmul.f32 %v342, %v342
  %v369 = vmul.f32 %v347, %v347
  %v370 = vmul.f32 %v350, %v350
  %v371 = vadd.f32 %v367, %v368
  %v372 = vadd.f32 %v371, %v369
  %v373 = vadd.f32 %v372, %v370
  %v374 = vrot.slane %v373, 4
  %v375 = vadd.f32 %v373, %v374
  %v376 = vrot.slane %v375, 2
  %v377 = vadd.f32 %v375, %v376
  %v378 = vrot.slane %v377, 1
  %v379 = vadd.f32 %v377, %v378
  %380 = vst [vmem:[%s4] sm:$0x1] %v379
  // Predicated region
  $region10: #{decoder_block_forward.2} parent=0 // pred_check
    _
  $region11: #{decoder_block_forward.2} parent=0 // pred_check_branch
    %382 = sbr.rel (0) target = $region13
  $region12: #{decoder_block_forward.2} parent=0 // pred_region
    _
  $region13: #{decoder_block_forward.2} parent=0 // pred_fallthru
    _
  // Predicated region
  $region14: #{decoder_block_forward.2} parent=0 // pred_check
    _
  $region15: #{decoder_block_forward.2} parent=0 // pred_check_branch
    %384 = sbr.rel (0) target = $region17
  $region16: #{decoder_block_forward.2} parent=0 // pred_region
    _
  $region17: #{decoder_block_forward.2} parent=0 // pred_fallthru
    _
  // Predicated region
  $region18: #{decoder_block_forward.2} parent=0 // pred_check
    _
  $region19: #{decoder_block_forward.2} parent=0 // pred_check_branch
    %386 = sbr.rel (0) target = $region21
  $region20: #{decoder_block_forward.2} parent=0 // pred_region
    _
  $region21: #{decoder_block_forward.2} parent=0 // pred_fallthru
    _
  // Predicated region
  $region22: #{decoder_block_forward.2} parent=0 // pred_check
    _
  $region23: #{decoder_block_forward.2} parent=0 // pred_check_branch
    %388 = sbr.rel (0) target = $region25
  $region24: #{decoder_block_forward.2} parent=0 // pred_region
    _
  $region25: #{decoder_block_forward.2} parent=0 // pred_fallthru
    _
  // Predicated region
  $region26: #{decoder_block_forward.2} parent=0 // pred_check
    _
  $region27: #{decoder_block_forward.2} parent=0 // pred_check_branch
    %390 = sbr.rel (0) target = $region29
  $region28: #{decoder_block_forward.2} parent=0 // pred_region
    _
  $region29: #{decoder_block_forward.2} parent=0 // pred_fallthru
    _
  // Predicated region
  $region30: #{decoder_block_forward.2} parent=0 // pred_check
    _
  $region31: #{decoder_block_forward.2} parent=0 // pred_check_branch
    %392 = sbr.rel (0) target = $region33
  $region32: #{decoder_block_forward.2} parent=0 // pred_region
    _
  $region33: #{decoder_block_forward.2} parent=0 // pred_fallthru
    _

</llo_original>
